<compile_context>
chip_gen: v5e
topology: v5e:2x2
jax: 0.10.0
libtpu: 0.0.40
codegen_flags: <defaults>
</compile_context>

<pallas_src>
import functools

import jax
import jax.numpy as jnp
from jax.experimental import pallas as pl
from jax.experimental.pallas import tpu as pltpu


def _round_up(v, m):
    return ((v + m - 1) // m) * m


def key_kernel(x_ref,
               w1_ref, b1_ref,
               w2_ref, b2_ref,
               w3_ref, b3_ref,
               o_ref, *, c1p, c2p):
    """One batch tile of: GLU -> GLU -> GLU -> L2 row-normalize."""
    mxu_dtype = w1_ref.dtype

    def glu(h, w_ref, b_ref, out_dim):
        # One fused matmul for both branches: columns [0, out_dim) feed the
        # sigmoid path, [out_dim, 2*out_dim) the relu gate.  f32 accumulation
        # via preferred_element_type, f32 epilogue.
        z = jnp.dot(h.astype(mxu_dtype), w_ref[...],
                    preferred_element_type=jnp.float32) + b_ref[...]
        s = jax.nn.sigmoid(z[:, :out_dim])
        g = jnp.maximum(z[:, out_dim:], 0.0)
        return s * g

    h = glu(x_ref[...], w1_ref, b1_ref, c1p)
    h = glu(h, w2_ref, b2_ref, c1p)
    h = glu(h, w3_ref, b3_ref, c2p)

    # torch.nn.functional.normalize(x, dim=1): x / max(||x||_2, 1e-12),
    # written as x * rsqrt(max(sum(x^2), 1e-24)) so the rsqrt goes to the EUP.
    # Padded columns are exactly 0 (zero bias -> relu(0) gates sigmoid(0)),
    # so they do not perturb the norm; garbage tail rows are masked on store.
    ss = jnp.sum(h * h, axis=-1, keepdims=True)
    o_ref[...] = (h * jax.lax.rsqrt(jnp.maximum(ss, 1e-24))).astype(o_ref.dtype)


def pack_key_params(params, *, mxu_dtype=jnp.bfloat16):
    """One-time packing of Key weights for the kernel (do NOT call per step).

    Fuses the sigmoid-path and gate-path weights of each GLU along the output
    dim, zero-pads features to lane-dense multiples of 128, and casts to the
    MXU input dtype.  Padded bias entries stay exactly 0 so padded columns
    compute sigmoid(0)*relu(0) = 0.
    """
    c1 = params["ws1"].shape[0]
    c2 = params["ws3"].shape[1]
    c1p = _round_up(c1, 128)
    c2p = _round_up(c2, 128)

    def pack(ws, bs, wg, bg, cin_p, cout_p):
        w = jnp.zeros((cin_p, 2 * cout_p), mxu_dtype)
        w = w.at[:ws.shape[0], :ws.shape[1]].set(ws.astype(mxu_dtype))
        w = w.at[:wg.shape[0], cout_p:cout_p + wg.shape[1]].set(
            wg.astype(mxu_dtype))
        b = jnp.zeros((1, 2 * cout_p), jnp.float32)
        b = b.at[:, :bs.shape[1]].set(bs)
        b = b.at[:, cout_p:cout_p + bg.shape[1]].set(bg)
        return w, b

    w1, b1 = pack(params["ws1"], params["bs1"],
                  params["wg1"], params["bg1"], c1p, c1p)
    w2, b2 = pack(params["ws2"], params["bs2"],
                  params["wg2"], params["bg2"], c1p, c1p)
    w3, b3 = pack(params["ws3"], params["bs3"],
                  params["wg3"], params["bg3"], c1p, c2p)
    return dict(w1=w1, b1=b1, w2=w2, b2=b2, w3=w3, b3=b3,
                c1=c1, c2=c2, c1p=c1p, c2p=c2p, mxu_dtype=mxu_dtype)


def key_forward(x, packed, *, tile_m=512, out_dtype=jnp.float32):
    """Pallas forward for Key(c1, c2).

    x: (N, c1) f32.  `packed` is the output of pack_key_params().  Returns
    (N, c2) in `out_dtype` (bf16 halves the dominant HBM write stream).
    """
    N, c1 = x.shape
    c1p, c2p, c2 = packed["c1p"], packed["c2p"], packed["c2"]
    mxu_dtype = packed["mxu_dtype"]
    assert c1 == packed["c1"], "x feature dim does not match packed params"

    if N == 0:
        return jnp.zeros((0, c2), out_dtype)

    # Batch tile: 512 default (mem-bound roofline), but shrink so the grid has
    # >= 2 parallel steps whenever N allows it (keeps both v7x TensorCores
    # busy).  Grid uses cdiv -> the tail block is partial, no row padding.
    tm = max(8, min(tile_m, _round_up(pl.cdiv(N, 2), 8)))
    grid = (pl.cdiv(N, tm),)

    # Input: pass x straight through when already lane-aligned (kernel casts
    # to the MXU dtype on the fly); otherwise one lane-padded bf16 copy.
    if c1 == c1p:
        xin = x
    else:
        xin = jnp.zeros((N, c1p), mxu_dtype).at[:, :c1].set(x.astype(mxu_dtype))

    x_spec = pl.BlockSpec((tm, c1p), lambda i: (i, 0))
    out_spec = pl.BlockSpec((tm, c2p), lambda i: (i, 0))

    def full_spec(a):
        # Weights/biases are small: keep whole arrays resident, tile only batch.
        return pl.BlockSpec(a.shape, lambda i: (0,) * a.ndim)

    kernel = functools.partial(key_kernel, c1p=c1p, c2p=c2p)

    out_bytes = jnp.dtype(out_dtype).itemsize
    in_bytes = xin.dtype.itemsize
    w_names = ("w1", "b1", "w2", "b2", "w3", "b3")
    w_total_bytes = sum(int(packed[k].size) * packed[k].dtype.itemsize
                        for k in w_names)

    # Advisory cost hint for XLA scheduling around the custom call.
    flops = 2 * N * (2 * c1p * 2 * c1p + c1p * 2 * c2p)
    transcendentals = N * (2 * c1p + c2p + 1)          # sigmoids + rsqrt
    bytes_accessed = (int(xin.size) * in_bytes + w_total_bytes
                      + N * c2p * out_bytes)
    cost = pl.CostEstimate(flops=flops, transcendentals=transcendentals,
                           bytes_accessed=bytes_accessed)

    # Scoped-VMEM budget: double-buffered x/out tiles + resident (double
    # buffered by Pallas) weights + f32 intermediates headroom, clamped to
    # v7x's 64 MiB physical VMEM.
    vmem_est = (2 * tm * c1p * in_bytes
                + 2 * tm * c2p * out_bytes
                + 2 * w_total_bytes
                + 8 * tm * 2 * max(c1p, c2p) * 4)
    vmem_limit = int(min(max(vmem_est, 32 * 1024 * 1024), 64 * 1024 * 1024))

    out = pl.pallas_call(
        kernel,
        out_shape=jax.ShapeDtypeStruct((N, c2p), out_dtype),
        grid_spec=pltpu.PrefetchScalarGridSpec(
            num_scalar_prefetch=0,
            grid=grid,
            in_specs=[x_spec,
                      full_spec(packed["w1"]), full_spec(packed["b1"]),
                      full_spec(packed["w2"]), full_spec(packed["b2"]),
                      full_spec(packed["w3"]), full_spec(packed["b3"])],
            out_specs=out_spec,
        ),
        compiler_params=pltpu.CompilerParams(
            dimension_semantics=("parallel",),
            vmem_limit_bytes=vmem_limit),
        cost_estimate=cost,
    )(xin, packed["w1"], packed["b1"], packed["w2"], packed["b2"],
      packed["w3"], packed["b3"])

    if c2 == c2p:
        return out
    return out[:, :c2]


def init_key_params(key, c1, c2):
    """Deterministic init mimicking nn.Linear's U(-1/sqrt(fan_in), +1/sqrt(fan_in)).

    Weights are stored transposed, i.e. shape (in, out); biases as (1, out).
    """
    names_and_shapes = [
        ("ws1", c1, c1), ("wg1", c1, c1),
        ("ws2", c1, c1), ("wg2", c1, c1),
        ("ws3", c1, c2), ("wg3", c1, c2),
    ]
    params = {}
    keys = jax.random.split(key, 2 * len(names_and_shapes))
    for idx, (name, fan_in, fan_out) in enumerate(names_and_shapes):
        bound = 1.0 / jnp.sqrt(jnp.float32(fan_in))
        wk, bk = keys[2 * idx], keys[2 * idx + 1]
        params[name] = jax.random.uniform(
            wk, (fan_in, fan_out), jnp.float32, -bound, bound)
        params["b" + name[1:]] = jax.random.uniform(
            bk, (1, fan_out), jnp.float32, -bound, bound)
    return params


def key_reference(x, params):
    """Pure-JAX reference of the PyTorch forward for validation."""
    def glu(h, ws, bs, wg, bg):
        return jax.nn.sigmoid(h @ ws + bs) * jax.nn.relu(h @ wg + bg)
    h = glu(x, params["ws1"], params["bs1"], params["wg1"], params["bg1"])
    h = glu(h, params["ws2"], params["bs2"], params["wg2"], params["bg2"])
    h = glu(h, params["ws3"], params["bs3"], params["wg3"], params["bg3"])
    nrm = jnp.sqrt(jnp.sum(h * h, axis=1, keepdims=True))
    return h / jnp.maximum(nrm, 1e-12)


if __name__ == "__main__":
    key = jax.random.PRNGKey(0)
    kx, kp, kx2 = jax.random.split(key, 3)

    # Small demo problem (matches the module's Linear dims).
    N, c1, c2 = 16, 32, 64
    x = jax.random.normal(kx, (N, c1), jnp.float32)
    params = init_key_params(kp, c1, c2)
    ref = key_reference(x, params)

    # Exact-ish path: f32 MXU inputs, f32 everything.
    packed_f32 = pack_key_params(params, mxu_dtype=jnp.float32)
    out_f32 = jax.block_until_ready(key_forward(x, packed_f32))
    assert out_f32.shape == (N, c2)
    assert jnp.allclose(out_f32, ref, atol=1e-3, rtol=1e-3)

    # Fast path: bf16 MXU inputs (f32 accumulation/epilogue), bf16 output.
    packed = pack_key_params(params, mxu_dtype=jnp.bfloat16)
    out_bf16 = jax.block_until_ready(
        key_forward(x, packed, out_dtype=jnp.bfloat16))
    assert out_bf16.shape == (N, c2)
    assert out_bf16.dtype == jnp.bfloat16
    assert jnp.allclose(out_bf16.astype(jnp.float32), ref, atol=2e-2, rtol=0)

    # Multi-step grid + ragged batch (exercises the partial tail block path).
    N2 = 300
    x2 = jax.random.normal(kx2, (N2, c1), jnp.float32)
    out2 = jax.block_until_ready(key_forward(x2, packed, tile_m=128))
    ref2 = key_reference(x2, params)
    assert out2.shape == (N2, c2)
    assert jnp.allclose(out2, ref2, atol=2e-2, rtol=0)

    print("KERNEL_OK")
</pallas_src>

<mosaic_0001>
module attributes {stable_mosaic.version = 11 : i64} {
  func.func @key_kernel(%arg0: i32, %arg1: memref<8x128xf32, #tpu.memory_space<vmem>>, %arg2: memref<128x256xf32, #tpu.memory_space<vmem>>, %arg3: memref<1x256xf32, #tpu.memory_space<vmem>>, %arg4: memref<128x256xf32, #tpu.memory_space<vmem>>, %arg5: memref<1x256xf32, #tpu.memory_space<vmem>>, %arg6: memref<128x256xf32, #tpu.memory_space<vmem>>, %arg7: memref<1x256xf32, #tpu.memory_space<vmem>>, %arg8: memref<8x128xf32, #tpu.memory_space<vmem>>) attributes {dimension_semantics = [#tpu.dimension_semantics<parallel>], iteration_bounds = array<i64: 2>, scalar_prefetch = 0 : i64, scratch_operands = 0 : i64, tpu.core_type = #tpu.core_type<tc>, window_params = [{transform_indices = @transform_0, window_bounds = array<i64: 8, 128>}, {pipeline_mode = #tpu.pipeline_mode<synchronous>, transform_indices = @transform_1, window_bounds = array<i64: 128, 256>}, {pipeline_mode = #tpu.pipeline_mode<synchronous>, transform_indices = @transform_2, window_bounds = array<i64: 1, 256>}, {pipeline_mode = #tpu.pipeline_mode<synchronous>, transform_indices = @transform_3, window_bounds = array<i64: 128, 256>}, {pipeline_mode = #tpu.pipeline_mode<synchronous>, transform_indices = @transform_4, window_bounds = array<i64: 1, 256>}, {pipeline_mode = #tpu.pipeline_mode<synchronous>, transform_indices = @transform_5, window_bounds = array<i64: 128, 256>}, {pipeline_mode = #tpu.pipeline_mode<synchronous>, transform_indices = @transform_6, window_bounds = array<i64: 1, 256>}, {transform_indices = @transform_7, window_bounds = array<i64: 8, 128>}]} {
    %c0 = arith.constant 0 : index
    %c0_0 = arith.constant 0 : index
    %0 = vector.load %arg1[%c0, %c0_0] : memref<8x128xf32, #tpu.memory_space<vmem>>, vector<8x128xf32>
    %c0_1 = arith.constant 0 : index
    %c0_2 = arith.constant 0 : index
    %1 = vector.load %arg2[%c0_1, %c0_2] : memref<128x256xf32, #tpu.memory_space<vmem>>, vector<128x256xf32>
    %cst = arith.constant dense<0.000000e+00> : vector<8x256xf32>
    %2 = tpu.matmul %0, %1, %cst {dimension_numbers = #tpu.dot_dimension_numbers<[1], [0], [0], [1], [0, 0, 1, 1], [], []>} : vector<8x128xf32>, vector<128x256xf32>, vector<8x256xf32> -> vector<8x256xf32>
    %c0_3 = arith.constant 0 : index
    %c0_4 = arith.constant 0 : index
    %3 = vector.load %arg3[%c0_3, %c0_4] : memref<1x256xf32, #tpu.memory_space<vmem>>, vector<1x256xf32>
    %4 = vector.broadcast %3 : vector<1x256xf32> to vector<8x256xf32>
    %5 = arith.addf %2, %4 : vector<8x256xf32>
    %6 = vector.extract_strided_slice %5 {offsets = [0, 0], sizes = [8, 128], strides = [1, 1]} : vector<8x256xf32> to vector<8x128xf32>
    %7 = arith.negf %6 : vector<8x128xf32>
    %8 = math.exp %7 : vector<8x128xf32>
    %cst_5 = arith.constant 1.000000e+00 : f32
    %9 = vector.broadcast %cst_5 : f32 to vector<8x128xf32>
    %10 = arith.addf %9, %8 : vector<8x128xf32>
    %11 = arith.divf %9, %10 : vector<8x128xf32>
    %12 = vector.extract_strided_slice %5 {offsets = [0, 128], sizes = [8, 128], strides = [1, 1]} : vector<8x256xf32> to vector<8x128xf32>
    %cst_6 = arith.constant 0.000000e+00 : f32
    %13 = vector.broadcast %cst_6 : f32 to vector<8x128xf32>
    %14 = arith.maximumf %12, %13 : vector<8x128xf32>
    %15 = arith.mulf %11, %14 : vector<8x128xf32>
    %c0_7 = arith.constant 0 : index
    %c0_8 = arith.constant 0 : index
    %16 = vector.load %arg4[%c0_7, %c0_8] : memref<128x256xf32, #tpu.memory_space<vmem>>, vector<128x256xf32>
    %cst_9 = arith.constant dense<0.000000e+00> : vector<8x256xf32>
    %17 = tpu.matmul %15, %16, %cst_9 {dimension_numbers = #tpu.dot_dimension_numbers<[1], [0], [0], [1], [0, 0, 1, 1], [], []>} : vector<8x128xf32>, vector<128x256xf32>, vector<8x256xf32> -> vector<8x256xf32>
    %c0_10 = arith.constant 0 : index
    %c0_11 = arith.constant 0 : index
    %18 = vector.load %arg5[%c0_10, %c0_11] : memref<1x256xf32, #tpu.memory_space<vmem>>, vector<1x256xf32>
    %19 = vector.broadcast %18 : vector<1x256xf32> to vector<8x256xf32>
    %20 = arith.addf %17, %19 : vector<8x256xf32>
    %21 = vector.extract_strided_slice %20 {offsets = [0, 0], sizes = [8, 128], strides = [1, 1]} : vector<8x256xf32> to vector<8x128xf32>
    %22 = arith.negf %21 : vector<8x128xf32>
    %23 = math.exp %22 : vector<8x128xf32>
    %cst_12 = arith.constant 1.000000e+00 : f32
    %24 = vector.broadcast %cst_12 : f32 to vector<8x128xf32>
    %25 = arith.addf %24, %23 : vector<8x128xf32>
    %26 = arith.divf %24, %25 : vector<8x128xf32>
    %27 = vector.extract_strided_slice %20 {offsets = [0, 128], sizes = [8, 128], strides = [1, 1]} : vector<8x256xf32> to vector<8x128xf32>
    %cst_13 = arith.constant 0.000000e+00 : f32
    %28 = vector.broadcast %cst_13 : f32 to vector<8x128xf32>
    %29 = arith.maximumf %27, %28 : vector<8x128xf32>
    %30 = arith.mulf %26, %29 : vector<8x128xf32>
    %c0_14 = arith.constant 0 : index
    %c0_15 = arith.constant 0 : index
    %31 = vector.load %arg6[%c0_14, %c0_15] : memref<128x256xf32, #tpu.memory_space<vmem>>, vector<128x256xf32>
    %cst_16 = arith.constant dense<0.000000e+00> : vector<8x256xf32>
    %32 = tpu.matmul %30, %31, %cst_16 {dimension_numbers = #tpu.dot_dimension_numbers<[1], [0], [0], [1], [0, 0, 1, 1], [], []>} : vector<8x128xf32>, vector<128x256xf32>, vector<8x256xf32> -> vector<8x256xf32>
    %c0_17 = arith.constant 0 : index
    %c0_18 = arith.constant 0 : index
    %33 = vector.load %arg7[%c0_17, %c0_18] : memref<1x256xf32, #tpu.memory_space<vmem>>, vector<1x256xf32>
    %34 = vector.broadcast %33 : vector<1x256xf32> to vector<8x256xf32>
    %35 = arith.addf %32, %34 : vector<8x256xf32>
    %36 = vector.extract_strided_slice %35 {offsets = [0, 0], sizes = [8, 128], strides = [1, 1]} : vector<8x256xf32> to vector<8x128xf32>
    %37 = arith.negf %36 : vector<8x128xf32>
    %38 = math.exp %37 : vector<8x128xf32>
    %cst_19 = arith.constant 1.000000e+00 : f32
    %39 = vector.broadcast %cst_19 : f32 to vector<8x128xf32>
    %40 = arith.addf %39, %38 : vector<8x128xf32>
    %41 = arith.divf %39, %40 : vector<8x128xf32>
    %42 = vector.extract_strided_slice %35 {offsets = [0, 128], sizes = [8, 128], strides = [1, 1]} : vector<8x256xf32> to vector<8x128xf32>
    %cst_20 = arith.constant 0.000000e+00 : f32
    %43 = vector.broadcast %cst_20 : f32 to vector<8x128xf32>
    %44 = arith.maximumf %42, %43 : vector<8x128xf32>
    %45 = arith.mulf %41, %44 : vector<8x128xf32>
    %46 = arith.mulf %45, %45 : vector<8x128xf32>
    %cst_21 = arith.constant dense<0.000000e+00> : vector<8xf32>
    %47 = vector.multi_reduction <add>, %46, %cst_21 [1] : vector<8x128xf32> to vector<8xf32>
    %48 = vector.shape_cast %47 : vector<8xf32> to vector<8x1xf32>
    %cst_22 = arith.constant 1.000000e-24 : f32
    %49 = vector.broadcast %cst_22 : f32 to vector<8x1xf32>
    %50 = arith.maximumf %48, %49 : vector<8x1xf32>
    %51 = math.rsqrt %50 : vector<8x1xf32>
    %52 = vector.broadcast %51 : vector<8x1xf32> to vector<8x128xf32>
    %53 = arith.mulf %45, %52 : vector<8x128xf32>
    %c0_23 = arith.constant 0 : index
    %c0_24 = arith.constant 0 : index
    %54 = vector.load %arg8[%c0_23, %c0_24] : memref<8x128xf32, #tpu.memory_space<vmem>>, vector<8x128xf32>
    tpu.vector_store %arg8[%c0_23, %c0_24], %53 {strides = array<i32>} : memref<8x128xf32, #tpu.memory_space<vmem>>, vector<8x128xf32>,
    return
  }
  func.func @transform_0(%arg0: i32) -> (i32, i32) {
    %c0_i32 = arith.constant 0 : i32
    %c0_i32_0 = arith.constant 0 : i32
    return %arg0, %c0_i32 : i32, i32
  }
  func.func @transform_1(%arg0: i32) -> (i32, i32) {
    %c0_i32 = arith.constant 0 : i32
    %c0_i32_0 = arith.constant 0 : i32
    %c0_i32_1 = arith.constant 0 : i32
    return %c0_i32, %c0_i32_0 : i32, i32
  }
  func.func @transform_2(%arg0: i32) -> (i32, i32) {
    %c0_i32 = arith.constant 0 : i32
    %c0_i32_0 = arith.constant 0 : i32
    %c0_i32_1 = arith.constant 0 : i32
    return %c0_i32, %c0_i32_0 : i32, i32
  }
  func.func @transform_3(%arg0: i32) -> (i32, i32) {
    %c0_i32 = arith.constant 0 : i32
    %c0_i32_0 = arith.constant 0 : i32
    %c0_i32_1 = arith.constant 0 : i32
    return %c0_i32, %c0_i32_0 : i32, i32
  }
  func.func @transform_4(%arg0: i32) -> (i32, i32) {
    %c0_i32 = arith.constant 0 : i32
    %c0_i32_0 = arith.constant 0 : i32
    %c0_i32_1 = arith.constant 0 : i32
    return %c0_i32, %c0_i32_0 : i32, i32
  }
  func.func @transform_5(%arg0: i32) -> (i32, i32) {
    %c0_i32 = arith.constant 0 : i32
    %c0_i32_0 = arith.constant 0 : i32
    %c0_i32_1 = arith.constant 0 : i32
    return %c0_i32, %c0_i32_0 : i32, i32
  }
  func.func @transform_6(%arg0: i32) -> (i32, i32) {
    %c0_i32 = arith.constant 0 : i32
    %c0_i32_0 = arith.constant 0 : i32
    %c0_i32_1 = arith.constant 0 : i32
    return %c0_i32, %c0_i32_0 : i32, i32
  }
  func.func @transform_7(%arg0: i32) -> (i32, i32) {
    %c0_i32 = arith.constant 0 : i32
    %c0_i32_0 = arith.constant 0 : i32
    return %arg0, %c0_i32 : i32, i32
  }
}

</mosaic_0001>

<llo_original>
// kernel: tpu_custom_call.1
$region0: #{tpu_custom_call.1}
  #allocation0 [shape = 'u32[]', space=smem, size = 0x4, offset = 0x4, fixed_abs, tag = 'smem constant byte address 0x4 - core index']
  #allocation1 [shape = 'u32[72,128]{1,0:T(1,128)}', space=vmem, size = 0x9000, scoped, tag = 'internal scratch']
  %s0 = inlined_call_operand.hbm [shape: f32[16,128], index: 0, kind: input, shape index: {}]
  %s1 = inlined_call_operand.hbm [shape: f32[128,256], index: 1, kind: input, shape index: {}]
  %s2 = inlined_call_operand.hbm [shape: f32[1,256], index: 2, kind: input, shape index: {}]
  %s3 = inlined_call_operand.hbm [shape: f32[128,256], index: 3, kind: input, shape index: {}]
  %s4 = inlined_call_operand.vmem [shape: f32[1,256], index: 4, kind: input, shape index: {}]
  %s5 = inlined_call_operand.hbm [shape: f32[128,256], index: 5, kind: input, shape index: {}]
  %s6 = inlined_call_operand.vmem [shape: f32[1,256], index: 6, kind: input, shape index: {}]
  %s7 = inlined_call_operand.hbm [shape: f32[16,128], index: 7, kind: output, shape index: {}]
  %s8 = sld [smem:[#allocation0]]
  $region81: #{tpu_custom_call.1} parent=0
    _
  %s10 = ssub.s32 1, %s8
  %s11 = scalar_select 0, %s10, %s8
  $region1: #{tpu_custom_call.1} parent=0
    #allocation2 [shape = 'u8[8192]{0}', space=vmem, size = 0x2000, scoped, tag = 'input window, operand 0']
    #allocation3 [shape = 's32[2]{0}', space=sflag, size = 0x8, scoped, tag = 'scoped memory for tpu_custom_call.1']
    #allocation4 [shape = 's32[2]{0}', space=sflag, size = 0x8, scoped, tag = 'scoped memory for tpu_custom_call.1']
    #allocation5 [shape = 'u8[131072]{0}', space=vmem, size = 0x20000, scoped, tag = 'input window, operand 1, single buffered']
    #allocation6 [shape = 's32[1]{0}', space=sflag, size = 0x4, scoped, tag = 'scoped memory for tpu_custom_call.1']
    #allocation7 [shape = 'u8[1024]{0}', space=vmem, size = 0x400, scoped, tag = 'input window, operand 2, single buffered']
    #allocation8 [shape = 'u8[131072]{0}', space=vmem, size = 0x20000, scoped, tag = 'input window, operand 3, single buffered']
    #allocation9 [shape = 's32[1]{0}', space=sflag, size = 0x4, scoped, tag = 'scoped memory for tpu_custom_call.1']
    #allocation10 [shape = 'u8[131072]{0}', space=vmem, size = 0x20000, scoped, tag = 'input window, operand 5, single buffered']
    #allocation11 [shape = 'u8[8192]{0}', space=vmem, size = 0x2000, scoped, tag = 'output window, operand 0']
    %12 = vsyncpa [#allocation3], 0
    %s13 = scalar_lea.sflag [#allocation3], 1
    %14 = vsyncpa %s13, 0
    %15 = vsyncpa [#allocation6], 0
    %16 = vsyncpa [#allocation9], 0
    %17 = vsyncpa [#allocation4], 0
    %s18 = scalar_lea.sflag [#allocation4], 1
    %19 = vsyncpa %s18, 0
    loop: start=0, step=1, limit=4
    $region2: #{tpu_custom_call.1} parent=1 // loop_pre_header
      _
    $region3: #{tpu_custom_call.1} parent=1 // loop_header
      %s21 = sphi 0, %s25
      %p22 = scmp.ge.s32.totalorder %s21, 4
      %s31 = sphi 0, %s33
      %s34 = sphi 0, %s31
      %s35 = sphi 0, %s34
      %s51 = sphi 0, %s35
      %s55 = sphi 0, %s55
      %s57 = sphi 0, %s55
      %s58 = sphi 0, %s57
      %s72 = sphi 0, %s58
      %s76 = sphi 0, %s76
      %s78 = sphi 0, %s76
      %s79 = sphi 0, %s78
      %s93 = sphi 0, %s79
      %s97 = sphi 0, %s97
      %s99 = sphi 0, %s97
      %s100 = sphi 0, %s99
      %s114 = sphi 0, %s100
      %s118 = sphi 0, %s118
      %s120 = sphi 0, %s118
      %s121 = sphi 0, %s120
      %s135 = sphi 0, %s121
      %s139 = sphi 0, %s139
      %s141 = sphi 0, %s139
      %s142 = sphi 0, %s141
      %s156 = sphi 0, %s142
      %s160 = sphi 0, %s160
      %s162 = sphi 0, %s160
      %s163 = sphi 0, %s162
      %s177 = sphi 0, %s163
      %s183 = sphi 0, %s185
      %s186 = sphi 0, %s183
      %s187 = sphi 0, %s186
      %s203 = sphi 0, %s187
    $region4: #{tpu_custom_call.1} parent=1 // loop_header_branch
      %24 = sbr.rel (%p22) target = $region8
    $region5: #{tpu_custom_call.1} parent=1 // loop_body
      %s26 = ssub.s32 %s21, 1
      %s27 = ssub.s32 %s21, 2
      %s28 = sadd.s32 %s21, 1
      %s29 = ssub.s32 %s21, %s28
      %p30 = scmp.eq.s32.totalorder %s29, 0
      %s32 = sadd.s32 %s31, 1
      %s33 = scalar_select %p30, %s31, %s32
      %p36 = pneg %p30
      %p37 = scmp.eq.s32.totalorder %s21, 1
      %p38 = por %p36, %p37
      %p39 = scmp.ne.s32.totalorder %s31, %s34
      %p40 = scmp.eq.s32.totalorder %s21, 0
      %p41 = por %p39, %p40
      %p42 = scmp.ne.s32.totalorder %s31, %s34
      %p43 = scmp.eq.s32.totalorder %s26, 1
      %p44 = por %p42, %p43
      %p45 = scmp.ne.s32.totalorder %s34, %s35
      %p46 = scmp.eq.s32.totalorder %s26, 0
      %p47 = por %p45, %p46
      %p48 = scmp.ne.s32.totalorder %s34, %s35
      %p49 = scmp.eq.s32.totalorder %s27, 1
      %p50 = por %p48, %p49
      %p52 = scmp.ne.s32.totalorder %s35, %s51
      %p53 = scmp.eq.s32.totalorder %s27, 0
      %p54 = por %p52, %p53
      %s56 = sadd.s32 %s55, 1
      %p59 = scmp.eq.s32.totalorder %s21, 1
      %p60 = scmp.ne.s32.totalorder %s55, %s57
      %p61 = scmp.eq.s32.totalorder %s21, 0
      %p62 = por %p60, %p61
      %p63 = scmp.ne.s32.totalorder %s55, %s57
      %p64 = scmp.eq.s32.totalorder %s26, 1
      %p65 = por %p63, %p64
      %p66 = scmp.ne.s32.totalorder %s57, %s58
      %p67 = scmp.eq.s32.totalorder %s26, 0
      %p68 = por %p66, %p67
      %p69 = scmp.ne.s32.totalorder %s57, %s58
      %p70 = scmp.eq.s32.totalorder %s27, 1
      %p71 = por %p69, %p70
      %p73 = scmp.ne.s32.totalorder %s58, %s72
      %p74 = scmp.eq.s32.totalorder %s27, 0
      %p75 = por %p73, %p74
      %s77 = sadd.s32 %s76, 1
      %p80 = scmp.eq.s32.totalorder %s21, 1
      %p81 = scmp.ne.s32.totalorder %s76, %s78
      %p82 = scmp.eq.s32.totalorder %s21, 0
      %p83 = por %p81, %p82
      %p84 = scmp.ne.s32.totalorder %s76, %s78
      %p85 = scmp.eq.s32.totalorder %s26, 1
      %p86 = por %p84, %p85
      %p87 = scmp.ne.s32.totalorder %s78, %s79
      %p88 = scmp.eq.s32.totalorder %s26, 0
      %p89 = por %p87, %p88
      %p90 = scmp.ne.s32.totalorder %s78, %s79
      %p91 = scmp.eq.s32.totalorder %s27, 1
      %p92 = por %p90, %p91
      %p94 = scmp.ne.s32.totalorder %s79, %s93
      %p95 = scmp.eq.s32.totalorder %s27, 0
      %p96 = por %p94, %p95
      %s98 = sadd.s32 %s97, 1
      %p101 = scmp.eq.s32.totalorder %s21, 1
      %p102 = scmp.ne.s32.totalorder %s97, %s99
      %p103 = scmp.eq.s32.totalorder %s21, 0
      %p104 = por %p102, %p103
      %p105 = scmp.ne.s32.totalorder %s97, %s99
      %p106 = scmp.eq.s32.totalorder %s26, 1
      %p107 = por %p105, %p106
      %p108 = scmp.ne.s32.totalorder %s99, %s100
      %p109 = scmp.eq.s32.totalorder %s26, 0
      %p110 = por %p108, %p109
      %p111 = scmp.ne.s32.totalorder %s99, %s100
      %p112 = scmp.eq.s32.totalorder %s27, 1
      %p113 = por %p111, %p112
      %p115 = scmp.ne.s32.totalorder %s100, %s114
      %p116 = scmp.eq.s32.totalorder %s27, 0
      %p117 = por %p115, %p116
      %s119 = sadd.s32 %s118, 1
      %p122 = scmp.eq.s32.totalorder %s21, 1
      %p123 = scmp.ne.s32.totalorder %s118, %s120
      %p124 = scmp.eq.s32.totalorder %s21, 0
      %p125 = por %p123, %p124
      %p126 = scmp.ne.s32.totalorder %s118, %s120
      %p127 = scmp.eq.s32.totalorder %s26, 1
      %p128 = por %p126, %p127
      %p129 = scmp.ne.s32.totalorder %s120, %s121
      %p130 = scmp.eq.s32.totalorder %s26, 0
      %p131 = por %p129, %p130
      %p132 = scmp.ne.s32.totalorder %s120, %s121
      %p133 = scmp.eq.s32.totalorder %s27, 1
      %p134 = por %p132, %p133
      %p136 = scmp.ne.s32.totalorder %s121, %s135
      %p137 = scmp.eq.s32.totalorder %s27, 0
      %p138 = por %p136, %p137
      %s140 = sadd.s32 %s139, 1
      %p143 = scmp.eq.s32.totalorder %s21, 1
      %p144 = scmp.ne.s32.totalorder %s139, %s141
      %p145 = scmp.eq.s32.totalorder %s21, 0
      %p146 = por %p144, %p145
      %p147 = scmp.ne.s32.totalorder %s139, %s141
      %p148 = scmp.eq.s32.totalorder %s26, 1
      %p149 = por %p147, %p148
      %p150 = scmp.ne.s32.totalorder %s141, %s142
      %p151 = scmp.eq.s32.totalorder %s26, 0
      %p152 = por %p150, %p151
      %p153 = scmp.ne.s32.totalorder %s141, %s142
      %p154 = scmp.eq.s32.totalorder %s27, 1
      %p155 = por %p153, %p154
      %p157 = scmp.ne.s32.totalorder %s142, %s156
      %p158 = scmp.eq.s32.totalorder %s27, 0
      %p159 = por %p157, %p158
      %s161 = sadd.s32 %s160, 1
      %p164 = scmp.eq.s32.totalorder %s21, 1
      %p165 = scmp.ne.s32.totalorder %s160, %s162
      %p166 = scmp.eq.s32.totalorder %s21, 0
      %p167 = por %p165, %p166
      %p168 = scmp.ne.s32.totalorder %s160, %s162
      %p169 = scmp.eq.s32.totalorder %s26, 1
      %p170 = por %p168, %p169
      %p171 = scmp.ne.s32.totalorder %s162, %s163
      %p172 = scmp.eq.s32.totalorder %s26, 0
      %p173 = por %p171, %p172
      %p174 = scmp.ne.s32.totalorder %s162, %s163
      %p175 = scmp.eq.s32.totalorder %s27, 1
      %p176 = por %p174, %p175
      %p178 = scmp.ne.s32.totalorder %s163, %s177
      %p179 = scmp.eq.s32.totalorder %s27, 0
      %p180 = por %p178, %p179
      %s181 = ssub.s32 %s21, %s28
      %p182 = scmp.eq.s32.totalorder %s181, 0
      %s184 = sadd.s32 %s183, 1
      %s185 = scalar_select %p182, %s183, %s184
      %p188 = pneg %p182
      %p189 = scmp.eq.s32.totalorder %s21, 1
      %p190 = por %p188, %p189
      %p191 = scmp.ne.s32.totalorder %s183, %s186
      %p192 = scmp.eq.s32.totalorder %s21, 0
      %p193 = por %p191, %p192
      %p194 = scmp.ne.s32.totalorder %s183, %s186
      %p195 = scmp.eq.s32.totalorder %s26, 1
      %p196 = por %p194, %p195
      %p197 = scmp.ne.s32.totalorder %s186, %s187
      %p198 = scmp.eq.s32.totalorder %s26, 0
      %p199 = por %p197, %p198
      %p200 = scmp.ne.s32.totalorder %s186, %s187
      %p201 = scmp.eq.s32.totalorder %s27, 1
      %p202 = por %p200, %p201
      %p204 = scmp.ne.s32.totalorder %s187, %s203
      %p205 = scmp.eq.s32.totalorder %s27, 0
      %p206 = por %p204, %p205
      %p207 = scmp.le.s32.totalorder 1, %s21
      %p208 = scmp.lt.s32.totalorder %s21, 3
      %p209 = pnand %p207, %p208
      %p210 = pneg %p209
      // Predicated region
      $region9: #{tpu_custom_call.1} parent=5 // pred_check
        _
      $region10: #{tpu_custom_call.1} parent=5 // pred_check_branch
        %212 = sbr.rel (%p209) target = $region12
      $region11: #{tpu_custom_call.1} parent=5 // pred_region
        %s213 = ssub.s32 %s21, 1
        // Predicated region
        $region13: #{tpu_custom_call.1} parent=11 // pred_check
          %p214 = pneg %p68
        $region14: #{tpu_custom_call.1} parent=11 // pred_check_branch
          %216 = sbr.rel (%p214) target = $region16
        $region15: #{tpu_custom_call.1} parent=11 // pred_region
          %218 = vsyncadd [#allocation6], 0
          %s219 = sshll.u32 %s1, 4
          %s220 = int_to_ptr.hbm [resolvable:$true] %s219
          %s221 = sshll.u32 [#allocation5], 4
          %s222 = int_to_ptr.vmem [resolvable:$true] %s221
          %227 = dma.hbm_to_vmem [thread:$0]  %s220, 4096, %s222, [#allocation6], 256, 256, 16
        $region16: #{tpu_custom_call.1} parent=11 // pred_fallthru
          _
        // Predicated region
        $region17: #{tpu_custom_call.1} parent=11 // pred_check
          %p228 = pneg %p89
        $region18: #{tpu_custom_call.1} parent=11 // pred_check_branch
          %230 = sbr.rel (%p228) target = $region20
        $region19: #{tpu_custom_call.1} parent=11 // pred_region
          %232 = vsyncadd [#allocation6], 0
          %s234 = sshll.u32 %s2, 4
          %s235 = int_to_ptr.hbm [resolvable:$true] %s234
          %s236 = sshll.u32 [#allocation7], 4
          %s237 = int_to_ptr.vmem [resolvable:$true] %s236
          %239 = dma.hbm_to_vmem [thread:$0]  %s235, 32, %s237, [#allocation6]
        $region20: #{tpu_custom_call.1} parent=11 // pred_fallthru
          _
        // Predicated region
        $region21: #{tpu_custom_call.1} parent=11 // pred_check
          %p240 = pneg %p110
        $region22: #{tpu_custom_call.1} parent=11 // pred_check_branch
          %242 = sbr.rel (%p240) target = $region24
        $region23: #{tpu_custom_call.1} parent=11 // pred_region
          %244 = vsyncadd [#allocation9], 0
          %s245 = sshll.u32 %s3, 4
          %s246 = int_to_ptr.hbm [resolvable:$true] %s245
          %s247 = sshll.u32 [#allocation8], 4
          %s248 = int_to_ptr.vmem [resolvable:$true] %s247
          %253 = dma.hbm_to_vmem [thread:$0]  %s246, 4096, %s248, [#allocation9], 256, 256, 16
        $region24: #{tpu_custom_call.1} parent=11 // pred_fallthru
          _
        // Predicated region
        $region25: #{tpu_custom_call.1} parent=11 // pred_check
          %p254 = pneg %p131
        $region26: #{tpu_custom_call.1} parent=11 // pred_check_branch
          %256 = sbr.rel (%p254) target = $region28
        $region27: #{tpu_custom_call.1} parent=11 // pred_region
          _
        $region28: #{tpu_custom_call.1} parent=11 // pred_fallthru
          _
        // Predicated region
        $region29: #{tpu_custom_call.1} parent=11 // pred_check
          %p257 = pneg %p152
        $region30: #{tpu_custom_call.1} parent=11 // pred_check_branch
          %259 = sbr.rel (%p257) target = $region32
        $region31: #{tpu_custom_call.1} parent=11 // pred_region
          %261 = vsyncadd [#allocation9], 0
          %s262 = sshll.u32 %s5, 4
          %s263 = int_to_ptr.hbm [resolvable:$true] %s262
          %s264 = sshll.u32 [#allocation10], 4
          %s265 = int_to_ptr.vmem [resolvable:$true] %s264
          %270 = dma.hbm_to_vmem [thread:$0]  %s263, 4096, %s265, [#allocation9], 256, 256, 16
        $region32: #{tpu_custom_call.1} parent=11 // pred_fallthru
          _
        // Predicated region
        $region33: #{tpu_custom_call.1} parent=11 // pred_check
          %p271 = pneg %p173
        $region34: #{tpu_custom_call.1} parent=11 // pred_check_branch
          %273 = sbr.rel (%p271) target = $region36
        $region35: #{tpu_custom_call.1} parent=11 // pred_region
          _
        $region36: #{tpu_custom_call.1} parent=11 // pred_fallthru
          _
      $region12: #{tpu_custom_call.1} parent=5 // pred_fallthru
        _
      %p274 = scmp.lt.s32.totalorder %s21, 2
      // Predicated region
      $region37: #{tpu_custom_call.1} parent=5 // pred_check
        %p275 = pneg %p274
      $region38: #{tpu_custom_call.1} parent=5 // pred_check_branch
        %277 = sbr.rel (%p275) target = $region40
      $region39: #{tpu_custom_call.1} parent=5 // pred_region
        // Predicated region
        $region41: #{tpu_custom_call.1} parent=39 // pred_check
          %p278 = pneg %p41
        $region42: #{tpu_custom_call.1} parent=39 // pred_check_branch
          %280 = sbr.rel (%p278) target = $region44
        $region43: #{tpu_custom_call.1} parent=39 // pred_region
          %s281 = sand.u32 %s31, 1
          %s282 = scalar_lea.sflag [#allocation3], %s281
          %s283 = sand.u32 %s31, 1
          %s284 = smul.addr %s283, 8
          %s285 = scalar_lea.vmem [#allocation2], %s284
          %287 = vsyncadd %s282, 0
          %s288 = smul.addr %s21, 8
          %s289 = scalar_lea.hbm %s0, %s288
          %s291 = sshll.u32 %s289, 4
          %s292 = int_to_ptr.hbm [resolvable:$true] %s291
          %s293 = sshll.u32 %s285, 4
          %s294 = int_to_ptr.vmem [resolvable:$true] %s293
          %296 = dma.hbm_to_vmem [thread:$0]  %s292, 128, %s294, %s282
        $region44: #{tpu_custom_call.1} parent=39 // pred_fallthru
          _
      $region40: #{tpu_custom_call.1} parent=5 // pred_fallthru
        _
      %p297 = scmp.le.s32.totalorder 1, %s21
      %p298 = scmp.lt.s32.totalorder %s21, 3
      %p299 = pnand %p297, %p298
      %p300 = pneg %p299
      // Predicated region
      $region45: #{tpu_custom_call.1} parent=5 // pred_check
        _
      $region46: #{tpu_custom_call.1} parent=5 // pred_check_branch
        %302 = sbr.rel (%p299) target = $region48
      $region47: #{tpu_custom_call.1} parent=5 // pred_region
        %s303 = ssub.s32 %s21, 1
        %s304 = sand.u32 %s34, 1
        %s305 = scalar_lea.sflag [#allocation3], %s304
        %s306 = sand.u32 %s34, 1
        %s307 = smul.addr %s306, 8
        %s308 = scalar_lea.vmem [#allocation2], %s307
        // Predicated region
        $region49: #{tpu_custom_call.1} parent=47 // pred_check
          %p309 = pneg %p47
        $region50: #{tpu_custom_call.1} parent=47 // pred_check_branch
          %311 = sbr.rel (%p309) target = $region52
        $region51: #{tpu_custom_call.1} parent=47 // pred_region
          %313 = dma.done %s305, 128
        $region52: #{tpu_custom_call.1} parent=47 // pred_fallthru
          _
        // Predicated region
        $region53: #{tpu_custom_call.1} parent=47 // pred_check
          %p314 = pneg %p68
        $region54: #{tpu_custom_call.1} parent=47 // pred_check_branch
          %316 = sbr.rel (%p314) target = $region56
        $region55: #{tpu_custom_call.1} parent=47 // pred_region
          %318 = dma.done [#allocation6], 4096
        $region56: #{tpu_custom_call.1} parent=47 // pred_fallthru
          _
        // Predicated region
        $region57: #{tpu_custom_call.1} parent=47 // pred_check
          %p319 = pneg %p89
        $region58: #{tpu_custom_call.1} parent=47 // pred_check_branch
          %321 = sbr.rel (%p319) target = $region60
        $region59: #{tpu_custom_call.1} parent=47 // pred_region
          %323 = dma.done [#allocation6], 32
        $region60: #{tpu_custom_call.1} parent=47 // pred_fallthru
          _
        // Predicated region
        $region61: #{tpu_custom_call.1} parent=47 // pred_check
          %p324 = pneg %p110
        $region62: #{tpu_custom_call.1} parent=47 // pred_check_branch
          %326 = sbr.rel (%p324) target = $region64
        $region63: #{tpu_custom_call.1} parent=47 // pred_region
          %328 = dma.done [#allocation9], 4096
        $region64: #{tpu_custom_call.1} parent=47 // pred_fallthru
          _
        // Predicated region
        $region65: #{tpu_custom_call.1} parent=47 // pred_check
          %p329 = pneg %p152
        $region66: #{tpu_custom_call.1} parent=47 // pred_check_branch
          %331 = sbr.rel (%p329) target = $region68
        $region67: #{tpu_custom_call.1} parent=47 // pred_region
          %333 = dma.done [#allocation9], 4096
        $region68: #{tpu_custom_call.1} parent=47 // pred_fallthru
          _
        %s334 = sand.u32 %s34, 1
        %s335 = scalar_lea.sflag [#allocation3], %s334
        %s336 = sand.u32 %s34, 1
        %s337 = smul.addr %s336, 8
        %s338 = scalar_lea.vmem [#allocation2], %s337
        %p339 = pneg %p47
        %p340 = pneg %p44
        %p341 = pneg %p68
        %p342 = pneg %p65
        %p343 = pneg %p89
        %p344 = pneg %p86
        %p345 = pneg %p110
        %p346 = pneg %p107
        %p347 = pneg %p131
        %p348 = pneg %p128
        %p349 = pneg %p152
        %p350 = pneg %p149
        %p351 = pneg %p173
        %p352 = pneg %p170
        %p353 = pneg %p199
        %p354 = pneg %p196
        %s355 = sand.u32 %s186, 1
        %s356 = scalar_lea.sflag [#allocation4], %s355
        %s357 = sand.u32 %s186, 1
        %s358 = smul.addr %s357, 8
        %s359 = scalar_lea.vmem [#allocation11], %s358
        %v360 = vld [vmem:[%s308] sm:$0xff]
        %v361 = vld [vmem:[#allocation5] sm:$0xff]
        %v362 = vld [vmem:[#allocation5 + $0x8] sm:$0xff]
        %v363 = vld [vmem:[#allocation5 + $0x10] sm:$0xff]
        %v364 = vld [vmem:[#allocation5 + $0x18] sm:$0xff]
        %v365 = vld [vmem:[#allocation5 + $0x20] sm:$0xff]
        %v366 = vld [vmem:[#allocation5 + $0x28] sm:$0xff]
        %v367 = vld [vmem:[#allocation5 + $0x30] sm:$0xff]
        %v368 = vld [vmem:[#allocation5 + $0x38] sm:$0xff]
        %v369 = vld [vmem:[#allocation5 + $0x40] sm:$0xff]
        %v370 = vld [vmem:[#allocation5 + $0x48] sm:$0xff]
        %v371 = vld [vmem:[#allocation5 + $0x50] sm:$0xff]
        %v372 = vld [vmem:[#allocation5 + $0x58] sm:$0xff]
        %v373 = vld [vmem:[#allocation5 + $0x60] sm:$0xff]
        %v374 = vld [vmem:[#allocation5 + $0x68] sm:$0xff]
        %v375 = vld [vmem:[#allocation5 + $0x70] sm:$0xff]
        %v376 = vld [vmem:[#allocation5 + $0x78] sm:$0xff]
        %v377 = vld [vmem:[#allocation5 + $0x80] sm:$0xff]
        %v378 = vld [vmem:[#allocation5 + $0x88] sm:$0xff]
        %v379 = vld [vmem:[#allocation5 + $0x90] sm:$0xff]
        %v380 = vld [vmem:[#allocation5 + $0x98] sm:$0xff]
        %v381 = vld [vmem:[#allocation5 + $0xa0] sm:$0xff]
        %v382 = vld [vmem:[#allocation5 + $0xa8] sm:$0xff]
        %v383 = vld [vmem:[#allocation5 + $0xb0] sm:$0xff]
        %v384 = vld [vmem:[#allocation5 + $0xb8] sm:$0xff]
        %v385 = vld [vmem:[#allocation5 + $0xc0] sm:$0xff]
        %v386 = vld [vmem:[#allocation5 + $0xc8] sm:$0xff]
        %v387 = vld [vmem:[#allocation5 + $0xd0] sm:$0xff]
        %v388 = vld [vmem:[#allocation5 + $0xd8] sm:$0xff]
        %v389 = vld [vmem:[#allocation5 + $0xe0] sm:$0xff]
        %v390 = vld [vmem:[#allocation5 + $0xe8] sm:$0xff]
        %v391 = vld [vmem:[#allocation5 + $0xf0] sm:$0xff]
        %v392 = vld [vmem:[#allocation5 + $0xf8] sm:$0xff]
        %v393 = vld [vmem:[#allocation7] sm:$0x3]
        %v395 = vperm.slane %v393, 0
        %v396 = vperm.slane %v393, 1
        %399 = vmatpush.msra.mxu0 %v391
        %400 = vmatpush.msra.mxu0 %v389
        %401 = vmatpush.msra.mxu0 %v387
        %402 = vmatpush.msra.mxu0 %v385
        %403 = vmatpush.msra.mxu0 %v383
        %404 = vmatpush.msra.mxu0 %v381
        %405 = vmatpush.msra.mxu0 %v379
        %406 = vmatpush.msra.mxu0 %v377
        %407 = vmatpush.msra.mxu0 %v375
        %408 = vmatpush.msra.mxu0 %v373
        %409 = vmatpush.msra.mxu0 %v371
        %410 = vmatpush.msra.mxu0 %v369
        %411 = vmatpush.msra.mxu0 %v367
        %412 = vmatpush.msra.mxu0 %v365
        %413 = vmatpush.msra.mxu0 %v363
        %414 = vmatpush.msra.mxu0 %v361
        %415 = vmatmul.f32.gmra.mxu0 %v360
        %v416 = vpop.f32.mrf.mxu0
        %v417 = vadd.f32 %v395, %v416
        %418 = vdwg.mxu0
        %419 = vmatpush.msra.mxu0 %v392
        %420 = vmatpush.msra.mxu0 %v390
        %421 = vmatpush.msra.mxu0 %v388
        %422 = vmatpush.msra.mxu0 %v386
        %423 = vmatpush.msra.mxu0 %v384
        %424 = vmatpush.msra.mxu0 %v382
        %425 = vmatpush.msra.mxu0 %v380
        %426 = vmatpush.msra.mxu0 %v378
        %427 = vmatpush.msra.mxu0 %v376
        %428 = vmatpush.msra.mxu0 %v374
        %429 = vmatpush.msra.mxu0 %v372
        %430 = vmatpush.msra.mxu0 %v370
        %431 = vmatpush.msra.mxu0 %v368
        %432 = vmatpush.msra.mxu0 %v366
        %433 = vmatpush.msra.mxu0 %v364
        %434 = vmatpush.msra.mxu0 %v362
        %435 = vmatmul.f32.gmra.mxu0 %v360
        %v436 = vpop.f32.mrf.mxu0
        %v437 = vadd.f32 %v396, %v436
        %438 = vdwg.mxu0
        %v439 = vxor.u32 %v417, 2147483648
        %v440 = vmul.f32 %v439, 1.442695
        %v441 = vpow.pop %v440
        %v442 = vadd.f32 %v441, 1.0
        %v443 = vrcp.pop %v442
        %v444 = vmul.f32 %v442, %v443
        %v445 = vsub.f32 1.0, %v444
        %v446 = vmul.f32 %v443, %v445
        %v447 = vadd.f32 %v443, %v446
        %vm448 = vweird.f32 %v442
        %vm449 = vweird.f32 %v443
        %vm450 = vmor %vm448, %vm449
        %v451 = vsel %vm450, %v443, %v447
        %v452 = vand.u32 2147483647, %v442
        %vm453 = vcmp.eq.f32.partialorder %v452, 8.507059e+37
        %v454 = vand.u32 %v442, 2147483648
        %v455 = vor.u32 1.1754944e-38, %v454
        %v456 = vsel %vm453, %v455, %v451
        %v457 = vmul.f32 1.0, %v456
        %v458 = vmax.f32 %v437, 0.0
        %v459 = vmul.f32 %v457, %v458
        %v460 = vld [vmem:[#allocation8] sm:$0xff]
        %v461 = vld [vmem:[#allocation8 + $0x8] sm:$0xff]
        %v462 = vld [vmem:[#allocation8 + $0x10] sm:$0xff]
        %v463 = vld [vmem:[#allocation8 + $0x18] sm:$0xff]
        %v464 = vld [vmem:[#allocation8 + $0x20] sm:$0xff]
        %v465 = vld [vmem:[#allocation8 + $0x28] sm:$0xff]
        %v466 = vld [vmem:[#allocation8 + $0x30] sm:$0xff]
        %v467 = vld [vmem:[#allocation8 + $0x38] sm:$0xff]
        %v468 = vld [vmem:[#allocation8 + $0x40] sm:$0xff]
        %v469 = vld [vmem:[#allocation8 + $0x48] sm:$0xff]
        %v470 = vld [vmem:[#allocation8 + $0x50] sm:$0xff]
        %v471 = vld [vmem:[#allocation8 + $0x58] sm:$0xff]
        %v472 = vld [vmem:[#allocation8 + $0x60] sm:$0xff]
        %v473 = vld [vmem:[#allocation8 + $0x68] sm:$0xff]
        %v474 = vld [vmem:[#allocation8 + $0x70] sm:$0xff]
        %v475 = vld [vmem:[#allocation8 + $0x78] sm:$0xff]
        %v476 = vld [vmem:[#allocation8 + $0x80] sm:$0xff]
        %v477 = vld [vmem:[#allocation8 + $0x88] sm:$0xff]
        %v478 = vld [vmem:[#allocation8 + $0x90] sm:$0xff]
        %v479 = vld [vmem:[#allocation8 + $0x98] sm:$0xff]
        %v480 = vld [vmem:[#allocation8 + $0xa0] sm:$0xff]
        %v481 = vld [vmem:[#allocation8 + $0xa8] sm:$0xff]
        %v482 = vld [vmem:[#allocation8 + $0xb0] sm:$0xff]
        %v483 = vld [vmem:[#allocation8 + $0xb8] sm:$0xff]
        %v484 = vld [vmem:[#allocation8 + $0xc0] sm:$0xff]
        %v485 = vld [vmem:[#allocation8 + $0xc8] sm:$0xff]
        %v486 = vld [vmem:[#allocation8 + $0xd0] sm:$0xff]
        %v487 = vld [vmem:[#allocation8 + $0xd8] sm:$0xff]
        %v488 = vld [vmem:[#allocation8 + $0xe0] sm:$0xff]
        %v489 = vld [vmem:[#allocation8 + $0xe8] sm:$0xff]
        %v490 = vld [vmem:[#allocation8 + $0xf0] sm:$0xff]
        %v491 = vld [vmem:[#allocation8 + $0xf8] sm:$0xff]
        %v492 = vld [vmem:[%s4] sm:$0x3]
        %v494 = vperm.slane %v492, 0
        %v495 = vperm.slane %v492, 1
        %498 = vmatpush.msra.mxu0 %v490
        %499 = vmatpush.msra.mxu0 %v488
        %500 = vmatpush.msra.mxu0 %v486
        %501 = vmatpush.msra.mxu0 %v484
        %502 = vmatpush.msra.mxu0 %v482
        %503 = vmatpush.msra.mxu0 %v480
        %504 = vmatpush.msra.mxu0 %v478
        %505 = vmatpush.msra.mxu0 %v476
        %506 = vmatpush.msra.mxu0 %v474
        %507 = vmatpush.msra.mxu0 %v472
        %508 = vmatpush.msra.mxu0 %v470
        %509 = vmatpush.msra.mxu0 %v468
        %510 = vmatpush.msra.mxu0 %v466
        %511 = vmatpush.msra.mxu0 %v464
        %512 = vmatpush.msra.mxu0 %v462
        %513 = vmatpush.msra.mxu0 %v460
        %514 = vmatmul.f32.gmra.mxu0 %v459
        %v515 = vpop.f32.mrf.mxu0
        %v516 = vadd.f32 %v494, %v515
        %517 = vdwg.mxu0
        %518 = vmatpush.msra.mxu0 %v491
        %519 = vmatpush.msra.mxu0 %v489
        %520 = vmatpush.msra.mxu0 %v487
        %521 = vmatpush.msra.mxu0 %v485
        %522 = vmatpush.msra.mxu0 %v483
        %523 = vmatpush.msra.mxu0 %v481
        %524 = vmatpush.msra.mxu0 %v479
        %525 = vmatpush.msra.mxu0 %v477
        %526 = vmatpush.msra.mxu0 %v475
        %527 = vmatpush.msra.mxu0 %v473
        %528 = vmatpush.msra.mxu0 %v471
        %529 = vmatpush.msra.mxu0 %v469
        %530 = vmatpush.msra.mxu0 %v467
        %531 = vmatpush.msra.mxu0 %v465
        %532 = vmatpush.msra.mxu0 %v463
        %533 = vmatpush.msra.mxu0 %v461
        %534 = vmatmul.f32.gmra.mxu0 %v459
        %v535 = vpop.f32.mrf.mxu0
        %v536 = vadd.f32 %v495, %v535
        %537 = vdwg.mxu0
        %v538 = vxor.u32 %v516, 2147483648
        %v539 = vmul.f32 %v538, 1.442695
        %v540 = vpow.pop %v539
        %v541 = vadd.f32 %v540, 1.0
        %v542 = vrcp.pop %v541
        %v543 = vmul.f32 %v541, %v542
        %v544 = vsub.f32 1.0, %v543
        %v545 = vmul.f32 %v542, %v544
        %v546 = vadd.f32 %v542, %v545
        %vm547 = vweird.f32 %v541
        %vm548 = vweird.f32 %v542
        %vm549 = vmor %vm547, %vm548
        %v550 = vsel %vm549, %v542, %v546
        %v551 = vand.u32 2147483647, %v541
        %vm552 = vcmp.eq.f32.partialorder %v551, 8.507059e+37
        %v553 = vand.u32 %v541, 2147483648
        %v554 = vor.u32 1.1754944e-38, %v553
        %v555 = vsel %vm552, %v554, %v550
        %v556 = vmul.f32 1.0, %v555
        %v557 = vmax.f32 %v536, 0.0
        %v558 = vmul.f32 %v556, %v557
        %v559 = vld [vmem:[#allocation10] sm:$0xff]
        %v560 = vld [vmem:[#allocation10 + $0x8] sm:$0xff]
        %v561 = vld [vmem:[#allocation10 + $0x10] sm:$0xff]
        %v562 = vld [vmem:[#allocation10 + $0x18] sm:$0xff]
        %v563 = vld [vmem:[#allocation10 + $0x20] sm:$0xff]
        %v564 = vld [vmem:[#allocation10 + $0x28] sm:$0xff]
        %v565 = vld [vmem:[#allocation10 + $0x30] sm:$0xff]
        %v566 = vld [vmem:[#allocation10 + $0x38] sm:$0xff]
        %v567 = vld [vmem:[#allocation10 + $0x40] sm:$0xff]
        %v568 = vld [vmem:[#allocation10 + $0x48] sm:$0xff]
        %v569 = vld [vmem:[#allocation10 + $0x50] sm:$0xff]
        %v570 = vld [vmem:[#allocation10 + $0x58] sm:$0xff]
        %v571 = vld [vmem:[#allocation10 + $0x60] sm:$0xff]
        %v572 = vld [vmem:[#allocation10 + $0x68] sm:$0xff]
        %v573 = vld [vmem:[#allocation10 + $0x70] sm:$0xff]
        %v574 = vld [vmem:[#allocation10 + $0x78] sm:$0xff]
        %v575 = vld [vmem:[#allocation10 + $0x80] sm:$0xff]
        %v576 = vld [vmem:[#allocation10 + $0x88] sm:$0xff]
        %v577 = vld [vmem:[#allocation10 + $0x90] sm:$0xff]
        %v578 = vld [vmem:[#allocation10 + $0x98] sm:$0xff]
        %v579 = vld [vmem:[#allocation10 + $0xa0] sm:$0xff]
        %v580 = vld [vmem:[#allocation10 + $0xa8] sm:$0xff]
        %v581 = vld [vmem:[#allocation10 + $0xb0] sm:$0xff]
        %v582 = vld [vmem:[#allocation10 + $0xb8] sm:$0xff]
        %v583 = vld [vmem:[#allocation10 + $0xc0] sm:$0xff]
        %v584 = vld [vmem:[#allocation10 + $0xc8] sm:$0xff]
        %v585 = vld [vmem:[#allocation10 + $0xd0] sm:$0xff]
        %v586 = vld [vmem:[#allocation10 + $0xd8] sm:$0xff]
        %v587 = vld [vmem:[#allocation10 + $0xe0] sm:$0xff]
        %v588 = vld [vmem:[#allocation10 + $0xe8] sm:$0xff]
        %v589 = vld [vmem:[#allocation10 + $0xf0] sm:$0xff]
        %v590 = vld [vmem:[#allocation10 + $0xf8] sm:$0xff]
        %v591 = vld [vmem:[%s6] sm:$0x3]
        %v593 = vperm.slane %v591, 0
        %v594 = vperm.slane %v591, 1
        %597 = vmatpush.msra.mxu0 %v589
        %598 = vmatpush.msra.mxu0 %v587
        %599 = vmatpush.msra.mxu0 %v585
        %600 = vmatpush.msra.mxu0 %v583
        %601 = vmatpush.msra.mxu0 %v581
        %602 = vmatpush.msra.mxu0 %v579
        %603 = vmatpush.msra.mxu0 %v577
        %604 = vmatpush.msra.mxu0 %v575
        %605 = vmatpush.msra.mxu0 %v573
        %606 = vmatpush.msra.mxu0 %v571
        %607 = vmatpush.msra.mxu0 %v569
        %608 = vmatpush.msra.mxu0 %v567
        %609 = vmatpush.msra.mxu0 %v565
        %610 = vmatpush.msra.mxu0 %v563
        %611 = vmatpush.msra.mxu0 %v561
        %612 = vmatpush.msra.mxu0 %v559
        %613 = vmatmul.f32.gmra.mxu0 %v558
        %v614 = vpop.f32.mrf.mxu0
        %v615 = vadd.f32 %v593, %v614
        %616 = vdwg.mxu0
        %617 = vmatpush.msra.mxu0 %v590
        %618 = vmatpush.msra.mxu0 %v588
        %619 = vmatpush.msra.mxu0 %v586
        %620 = vmatpush.msra.mxu0 %v584
        %621 = vmatpush.msra.mxu0 %v582
        %622 = vmatpush.msra.mxu0 %v580
        %623 = vmatpush.msra.mxu0 %v578
        %624 = vmatpush.msra.mxu0 %v576
        %625 = vmatpush.msra.mxu0 %v574
        %626 = vmatpush.msra.mxu0 %v572
        %627 = vmatpush.msra.mxu0 %v570
        %628 = vmatpush.msra.mxu0 %v568
        %629 = vmatpush.msra.mxu0 %v566
        %630 = vmatpush.msra.mxu0 %v564
        %631 = vmatpush.msra.mxu0 %v562
        %632 = vmatpush.msra.mxu0 %v560
        %633 = vmatmul.f32.gmra.mxu0 %v558
        %v634 = vpop.f32.mrf.mxu0
        %v635 = vadd.f32 %v594, %v634
        %636 = vdwg.mxu0
        %v637 = vxor.u32 %v615, 2147483648
        %v638 = vmul.f32 %v637, 1.442695
        %v639 = vpow.pop %v638
        %v640 = vadd.f32 %v639, 1.0
        %v641 = vrcp.pop %v640
        %v642 = vmul.f32 %v640, %v641
        %v643 = vsub.f32 1.0, %v642
        %v644 = vmul.f32 %v641, %v643
        %v645 = vadd.f32 %v641, %v644
        %vm646 = vweird.f32 %v640
        %vm647 = vweird.f32 %v641
        %vm648 = vmor %vm646, %vm647
        %v649 = vsel %vm648, %v641, %v645
        %v650 = vand.u32 2147483647, %v640
        %vm651 = vcmp.eq.f32.partialorder %v650, 8.507059e+37
        %v652 = vand.u32 %v640, 2147483648
        %v653 = vor.u32 1.1754944e-38, %v652
        %v654 = vsel %vm651, %v653, %v649
        %v655 = vmul.f32 1.0, %v654
        %v656 = vmax.f32 %v635, 0.0
        %v657 = vmul.f32 %v655, %v656
        %v658 = vmul.f32 %v657, %v657
        %659 = vadd.xlane.f32.xlu0 %v658
        %v660 = vpop.xlane.xlu0 %659
        %v661 = vmax.f32 %v660, 1e-24
        %v662 = vrsqrt.pop %v661
        %v663 = vmul.f32 %v662, %v661
        %v664 = vmul.f32 %v663, %v662
        %v665 = vmul.f32 0.5, %v664
        %v666 = vsub.f32 1.5, %v665
        %v667 = vmul.f32 %v662, %v666
        %vm668 = vweird.f32 %v661
        %vm669 = vweird.f32 %v662
        %vm670 = vmor %vm668, %vm669
        %v671 = vsel %vm670, %v662, %v667
        %v672 = vmul.f32 %v657, %v671
        %673 = vst [vmem:[%s359] sm:$0xff] %v672
        %s674 = sand.u32 %s186, 1
        %s675 = scalar_lea.sflag [#allocation4], %s674
        %s676 = sand.u32 %s186, 1
        %s677 = smul.addr %s676, 8
        %s678 = scalar_lea.vmem [#allocation11], %s677
        // Predicated region
        $region69: #{tpu_custom_call.1} parent=47 // pred_check
          %p679 = pneg %p196
        $region70: #{tpu_custom_call.1} parent=47 // pred_check_branch
          %681 = sbr.rel (%p679) target = $region72
        $region71: #{tpu_custom_call.1} parent=47 // pred_region
          %683 = vsyncadd %s675, 0
          %s684 = smul.addr %s26, 8
          %s685 = scalar_lea.hbm %s7, %s684
          %s687 = sshll.u32 %s678, 4
          %s688 = int_to_ptr.vmem [resolvable:$true] %s687
          %s689 = sshll.u32 %s685, 4
          %s690 = int_to_ptr.hbm [resolvable:$true] %s689
          %692 = dma.vmem_to_hbm [thread:$0]  %s688, 128, %s690, %s675
        $region72: #{tpu_custom_call.1} parent=47 // pred_fallthru
          _
      $region48: #{tpu_custom_call.1} parent=5 // pred_fallthru
        _
      %p693 = scmp.le.s32.totalorder 2, %s21
      // Predicated region
      $region73: #{tpu_custom_call.1} parent=5 // pred_check
        %p694 = pneg %p693
      $region74: #{tpu_custom_call.1} parent=5 // pred_check_branch
        %696 = sbr.rel (%p694) target = $region76
      $region75: #{tpu_custom_call.1} parent=5 // pred_region
        %s697 = ssub.s32 %s21, 2
        // Predicated region
        $region77: #{tpu_custom_call.1} parent=75 // pred_check
          %p698 = pneg %p202
        $region78: #{tpu_custom_call.1} parent=75 // pred_check_branch
          %700 = sbr.rel (%p698) target = $region80
        $region79: #{tpu_custom_call.1} parent=75 // pred_region
          %s701 = sand.u32 %s187, 1
          %s702 = scalar_lea.sflag [#allocation4], %s701
          %s703 = sand.u32 %s187, 1
          %s704 = smul.addr %s703, 8
          %s705 = scalar_lea.vmem [#allocation11], %s704
          %707 = dma.done %s702, 128
        $region80: #{tpu_custom_call.1} parent=75 // pred_fallthru
          _
      $region76: #{tpu_custom_call.1} parent=5 // pred_fallthru
        _
    $region6: #{tpu_custom_call.1} parent=1 // loop_footer
      %s25 = sadd.s32 1, %s21
    $region7: #{tpu_custom_call.1} parent=1 // loop_footer_branch
      %20 = sbr.rel target = $region3
    $region8: #{tpu_custom_call.1} parent=1 // loop_exit
      _
    %708 = vsyncpa [#allocation3], 1
    %s709 = scalar_lea.sflag [#allocation3], 1
    %710 = vsyncpa %s709, 1
    %711 = vsyncpa [#allocation6], 1
    %712 = vsyncpa [#allocation9], 1
    %713 = vsyncpa [#allocation4], 1
    %s714 = scalar_lea.sflag [#allocation4], 1
    %715 = vsyncpa %s714, 1

</llo_original>
